<compile_context>
chip_gen: v5e
topology: v5e:2x2
jax: 0.10.0
libtpu: 0.0.40
codegen_flags: <defaults>
</compile_context>

<pallas_src>
import functools
import math

import jax
import jax.numpy as jnp
from jax.experimental import pallas as pl
from jax.experimental.pallas import tpu as pltpu


# ------------------------------------------------------------------ helpers --
def _round_up(v, m):
    return ((v + m - 1) // m) * m


def _fit_tile(dim, pref, unit):
    """Largest tile t <= pref with dim % t == 0 and t % unit == 0 (fallback: full dim)."""
    t = (min(pref, dim) // unit) * unit
    while t >= unit:
        if dim % t == 0:
            return t
        t -= unit
    return dim


def _pad_axis(arr, axis, target):
    pad = target - arr.shape[axis]
    if pad <= 0:
        return arr
    widths = [(0, 0)] * arr.ndim
    widths[axis] = (0, pad)
    return jnp.pad(arr, widths)


# --------------------------------------------------------------- kernels -----
def _bayes_sample_kernel(x_ref, wmu_ref, wlv_ref, epsw_ref,
                         bmu_ref, blv_ref, epsb_ref, o_ref, acc_ref):
    """y = x @ (wmu + eps_w * exp(0.5*wlv)) + (bmu + eps_b * exp(0.5*blv)).

    x_ref:   (tm, tk)          activations (any float dtype; cast to bf16 for the MXU)
    w*_ref:  (tk, tn) f32      weight params already stored (K, N)
    b*_ref:  (1, tn)  f32
    o_ref:   (tm, tn) f32
    acc_ref: (tm, tn) f32 scratch accumulator (resident across the K grid axis)
    """
    k = pl.program_id(2)

    # Reparameterized weight sample in f32 (never written to HBM), bf16 into the MXU.
    w = wmu_ref[...] + epsw_ref[...] * jnp.exp(0.5 * wlv_ref[...])
    part = jnp.dot(x_ref[...].astype(jnp.bfloat16), w.astype(jnp.bfloat16),
                   preferred_element_type=jnp.float32)

    @pl.when(k == 0)
    def _():
        acc_ref[...] = part           # first K block: write, don't zero-then-add

    @pl.when(k > 0)
    def _():
        acc_ref[...] += part

    @pl.when(k == pl.num_programs(2) - 1)
    def _():
        b = bmu_ref[...] + epsb_ref[...] * jnp.exp(0.5 * blv_ref[...])   # (1, tn)
        o_ref[...] = (acc_ref[...] + b).astype(o_ref.dtype)


def _bayes_mean_kernel(x_ref, wmu_ref, bmu_ref, o_ref, acc_ref):
    """Deterministic path (sample=False): y = x @ wmu + bmu. Only 1 weight stream, no exp."""
    k = pl.program_id(2)
    part = jnp.dot(x_ref[...].astype(jnp.bfloat16), wmu_ref[...].astype(jnp.bfloat16),
                   preferred_element_type=jnp.float32)

    @pl.when(k == 0)
    def _():
        acc_ref[...] = part

    @pl.when(k > 0)
    def _():
        acc_ref[...] += part

    @pl.when(k == pl.num_programs(2) - 1)
    def _():
        o_ref[...] = (acc_ref[...] + bmu_ref[...]).astype(o_ref.dtype)


# --------------------------------------------------- fused Bayesian linear ---
def bayesian_linear(x, params_t, eps_w_t=None, eps_b=None, *, sample=True,
                    tm=512, tn=512, tk=1024, vmem_budget=24 * 1024 * 1024):
    """Forward pass of BayesianLinear as one fused Pallas kernel.

    x:        (..., in_features)
    params_t: dict from prepare_params(): weight_mu_t / weight_logvar_t are (K, N),
              bias_mu / bias_logvar are (N,)   (transposed ONCE, off the hot path)
    eps_w_t:  (K, N) standard-normal noise (ignored when sample=False)
    eps_b:    (N,)   standard-normal noise (ignored when sample=False)
    """
    wmu_t = params_t["weight_mu_t"]
    bmu = params_t["bias_mu"]
    K, N = wmu_t.shape

    lead = x.shape[:-1]
    M = math.prod(lead) if lead else 1
    x2d = x.reshape(M, K)                      # keep input dtype (bf16 stays bf16)

    # ---- pad awkward dims up instead of degrading to tiny tiles --------------
    Mp = _round_up(M, 8)
    if Mp > tm:
        Mp = _round_up(Mp, tm)
    Kp = _round_up(K, 128)
    Np = _round_up(N, 128)
    x2d = _pad_axis(_pad_axis(x2d, 0, Mp), 1, Kp)

    # ---- tile selection -------------------------------------------------------
    # One M block whenever the x strip fits: avoids re-streaming / re-sampling the
    # weights once per M block.
    tm = Mp if Mp <= tm else _fit_tile(Mp, tm, 8)
    tn = _fit_tile(Np, tn, 128)
    tk = _fit_tile(Kp, tk, 128)

    n_streams = 3 if sample else 1
    xb = x2d.dtype.itemsize
    wb = wmu_t.dtype.itemsize

    def _working_set(tk_):
        per_iter = tm * tk_ * xb + n_streams * tk_ * tn * wb + n_streams * tn * 4 + tm * tn * 4
        return 2 * per_iter + tm * tn * 4      # double-buffered + f32 accumulator

    # Keep the double-buffered working set under ~24 MiB (safe on v7x's 64 MiB VMEM);
    # halve tk first, never tm or the lane-dense output tn.
    while _working_set(tk) > vmem_budget and tk > 128:
        new_tk = _fit_tile(Kp, max(tk // 2, 128), 128)
        if new_tk >= tk:
            break
        tk = new_tk

    # v7x megacore: make sure the parallel (i, j) part of the grid has >= 2 blocks
    # (shrink tn, never tm).  No-op on v5e/v6e (1 TC).
    if (Mp // tm) * (Np // tn) < 2:
        half = tn // 2
        if half >= 128 and half % 128 == 0 and Np % half == 0:
            tn = half

    grid = (Mp // tm, Np // tn, Kp // tk)

    x_spec = pl.BlockSpec((tm, tk), lambda i, j, k: (i, k))
    w_spec = pl.BlockSpec((tk, tn), lambda i, j, k: (k, j))
    b_spec = pl.BlockSpec((1, tn), lambda i, j, k: (0, j))
    out_spec = pl.BlockSpec((tm, tn), lambda i, j, k: (i, j))

    if sample:
        wlv_t = params_t["weight_logvar_t"]
        blv = params_t["bias_logvar"]
        if eps_w_t is None:
            eps_w_t = jnp.zeros_like(wmu_t)
        if eps_b is None:
            eps_b = jnp.zeros_like(bmu)
        args = [
            x2d,
            _pad_axis(_pad_axis(wmu_t, 0, Kp), 1, Np),
            _pad_axis(_pad_axis(wlv_t, 0, Kp), 1, Np),
            _pad_axis(_pad_axis(eps_w_t, 0, Kp), 1, Np),
            _pad_axis(bmu.reshape(1, N), 1, Np),
            _pad_axis(blv.reshape(1, N), 1, Np),
            _pad_axis(eps_b.reshape(1, N), 1, Np),
        ]
        in_specs = [x_spec, w_spec, w_spec, w_spec, b_spec, b_spec, b_spec]
        kernel = _bayes_sample_kernel
        flops = 2 * Mp * Np * Kp + grid[0] * 2 * Kp * Np + 2 * Np
        transcendentals = grid[0] * Kp * Np + Np
        bytes_accessed = (grid[1] * Mp * Kp * xb + grid[0] * 3 * Kp * Np * wb
                          + Mp * Np * 4 + 3 * Np * 4)
    else:
        args = [
            x2d,
            _pad_axis(_pad_axis(wmu_t, 0, Kp), 1, Np),
            _pad_axis(bmu.reshape(1, N), 1, Np),
        ]
        in_specs = [x_spec, w_spec, b_spec]
        kernel = _bayes_mean_kernel
        flops = 2 * Mp * Np * Kp
        transcendentals = 0
        bytes_accessed = (grid[1] * Mp * Kp * xb + grid[0] * Kp * Np * wb
                          + Mp * Np * 4 + Np * 4)

    out = pl.pallas_call(
        kernel,
        out_shape=jax.ShapeDtypeStruct((Mp, Np), jnp.float32),
        grid_spec=pltpu.PrefetchScalarGridSpec(
            num_scalar_prefetch=0,
            grid=grid,
            in_specs=in_specs,
            out_specs=out_spec,
            scratch_shapes=[pltpu.VMEM((tm, tn), jnp.float32)],
        ),
        compiler_params=pltpu.CompilerParams(
            dimension_semantics=("parallel", "parallel", "arbitrary"),
            vmem_limit_bytes=32 * 1024 * 1024),
        cost_estimate=pl.CostEstimate(flops=flops,
                                      transcendentals=transcendentals,
                                      bytes_accessed=bytes_accessed),
    )(*args)

    out = out[:M, :N]
    return out.reshape(lead + (N,))


# ----------------------------------------------------------- KL divergence ---
def _kl_kernel(wmu_ref, wlv_ref, bmu_ref, blv_ref, o_ref, *, prior_mu, prior_logvar):
    i = pl.program_id(0)

    def kl_sum(mu, logvar):
        # 0.5 * sum(logvar - prior_lv + (exp(prior_lv) + (mu - prior_mu)^2) / exp(logvar) - 1)
        term = (logvar - prior_logvar
                + (jnp.exp(prior_logvar) + jnp.square(mu - prior_mu)) * jnp.exp(-logvar)
                - 1.0)
        return 0.5 * jnp.sum(term, keepdims=True)     # (1, 1)

    @pl.when(i == 0)
    def _():
        o_ref[...] = jnp.zeros_like(o_ref)

    o_ref[...] += kl_sum(wmu_ref[...], wlv_ref[...])

    @pl.when(i == pl.num_programs(0) - 1)
    def _():
        o_ref[...] += kl_sum(bmu_ref[...], blv_ref[...])


def kl_divergence(params_t, prior_mu=0.0, prior_logvar=0.0, *, rows_per_block=512):
    """KL(q || prior) for all weight/bias params, tiled over weight-row blocks."""
    wmu_t = params_t["weight_mu_t"]          # (K, N)
    wlv_t = params_t["weight_logvar_t"]
    bmu = params_t["bias_mu"].reshape(1, -1)
    blv = params_t["bias_logvar"].reshape(1, -1)
    K, N = wmu_t.shape
    tr = _fit_tile(K, rows_per_block, 8)
    grid = (K // tr,)

    w_spec = pl.BlockSpec((tr, N), lambda i: (i, 0))
    b_spec = pl.BlockSpec((1, N), lambda i: (0, 0))

    out = pl.pallas_call(
        functools.partial(_kl_kernel, prior_mu=float(prior_mu),
                          prior_logvar=float(prior_logvar)),
        out_shape=jax.ShapeDtypeStruct((1, 1), jnp.float32),
        grid=grid,
        in_specs=[w_spec, w_spec, b_spec, b_spec],
        out_specs=pl.BlockSpec((1, 1), lambda i: (0, 0)),
        compiler_params=pltpu.CompilerParams(
            dimension_semantics=("arbitrary",),
            vmem_limit_bytes=32 * 1024 * 1024),
    )(wmu_t, wlv_t, bmu, blv)
    return out[0, 0]


# --------------------------------------------------------------------- params
def init_params(key, in_features, out_features):
    """Torch-layout parameters: weight_* is (out_features, in_features)."""
    k1, k2, k3, k4 = jax.random.split(key, 4)
    return {
        "weight_mu": jax.random.normal(k1, (out_features, in_features), jnp.float32),
        "weight_logvar": jax.random.normal(k2, (out_features, in_features), jnp.float32),
        "bias_mu": jax.random.normal(k3, (out_features,), jnp.float32),
        "bias_logvar": jax.random.normal(k4, (out_features,), jnp.float32),
    }


def prepare_params(params):
    """One-time (K, N) transposition of the weight params -- NOT on the per-call hot path."""
    return {
        "weight_mu_t": jnp.asarray(params["weight_mu"]).T,
        "weight_logvar_t": jnp.asarray(params["weight_logvar"]).T,
        "bias_mu": jnp.asarray(params["bias_mu"]),
        "bias_logvar": jnp.asarray(params["bias_logvar"]),
    }


# ---------------------------------------------------------- pure-JAX reference
def _ref_forward(x, params, eps_w, eps_b, sample=True):
    if sample:
        w = params["weight_mu"] + eps_w * jnp.exp(0.5 * params["weight_logvar"])
        b = params["bias_mu"] + eps_b * jnp.exp(0.5 * params["bias_logvar"])
    else:
        w = params["weight_mu"]
        b = params["bias_mu"]
    x2d = x.reshape(-1, x.shape[-1])
    y = jnp.dot(x2d, w.T, precision=jax.lax.Precision.HIGHEST) + b
    return y.reshape(x.shape[:-1] + (w.shape[0],))


def _ref_kl(params, prior_mu=0.0, prior_logvar=0.0):
    def kl(mu, logvar):
        return 0.5 * jnp.sum(logvar - prior_logvar
                             + (jnp.exp(prior_logvar) + (mu - prior_mu) ** 2)
                             / jnp.exp(logvar) - 1.0)
    return (kl(params["weight_mu"], params["weight_logvar"])
            + kl(params["bias_mu"], params["bias_logvar"]))


# ----------------------------------------------------------------------- main
if __name__ == "__main__":
    batch, seq = 2, 8
    in_features, out_features = 128, 256

    key = jax.random.PRNGKey(0)
    k_p, k_x, k_ew, k_eb = jax.random.split(key, 4)
    params = init_params(k_p, in_features, out_features)     # torch layout (out, in)
    params_t = prepare_params(params)                        # (K, N) once, off hot path
    x = jax.random.normal(k_x, (batch, seq, in_features), dtype=jnp.float32)
    # eps generated directly in the (K, N) layout the kernel consumes.
    eps_w_t = jax.random.normal(k_ew, (in_features, out_features), dtype=jnp.float32)
    eps_b = jax.random.normal(k_eb, (out_features,), dtype=jnp.float32)

    # Sampled (stochastic) path.
    out = bayesian_linear(x, params_t, eps_w_t, eps_b, sample=True)
    out = jax.block_until_ready(out)
    ref = _ref_forward(x, params, eps_w_t.T, eps_b, sample=True)
    assert out.shape == (batch, seq, out_features)
    assert bool(jnp.all(jnp.isfinite(out)))
    rel_err = float(jnp.linalg.norm(out - ref) / (jnp.linalg.norm(ref) + 1e-6))
    assert rel_err < 1e-2, f"sampled-path rel err {rel_err}"
    assert bool(jnp.allclose(out, ref, rtol=2e-2, atol=2e-1))

    # Deterministic path (sample=False -> use the means; single weight stream kernel).
    out_det = bayesian_linear(x, params_t, sample=False)
    out_det = jax.block_until_ready(out_det)
    ref_det = _ref_forward(x, params, None, None, sample=False)
    rel_err_det = float(jnp.linalg.norm(out_det - ref_det) / (jnp.linalg.norm(ref_det) + 1e-6))
    assert rel_err_det < 1e-2, f"mean-path rel err {rel_err_det}"
    assert bool(jnp.allclose(out_det, ref_det, rtol=2e-2, atol=2e-1))

    # KL divergence (not on the forward hot path) -- tiled reduction kernel.
    kl = jax.block_until_ready(kl_divergence(params_t))
    kl_ref = _ref_kl(params)
    assert bool(jnp.isfinite(kl))
    assert bool(jnp.allclose(kl, kl_ref, rtol=1e-3, atol=1e-1))

    print("KERNEL_OK")
</pallas_src>

<mosaic_0001>
module attributes {stable_mosaic.version = 11 : i64} {
  func.func @_bayes_sample_kernel(%arg0: i32, %arg1: i32, %arg2: i32, %arg3: memref<16x128xf32, #tpu.memory_space<vmem>>, %arg4: memref<128x128xf32, #tpu.memory_space<vmem>>, %arg5: memref<128x128xf32, #tpu.memory_space<vmem>>, %arg6: memref<128x128xf32, #tpu.memory_space<vmem>>, %arg7: memref<1x128xf32, #tpu.memory_space<vmem>>, %arg8: memref<1x128xf32, #tpu.memory_space<vmem>>, %arg9: memref<1x128xf32, #tpu.memory_space<vmem>>, %arg10: memref<16x128xf32, #tpu.memory_space<vmem>>, %arg11: memref<16x128xf32, #tpu.memory_space<vmem>>) attributes {dimension_semantics = [#tpu.dimension_semantics<parallel>, #tpu.dimension_semantics<parallel>, #tpu.dimension_semantics<arbitrary>], iteration_bounds = array<i64: 1, 2, 1>, scalar_prefetch = 0 : i64, scratch_operands = 1 : i64, tpu.core_type = #tpu.core_type<tc>, window_params = [{transform_indices = @transform_0, window_bounds = array<i64: 16, 128>}, {transform_indices = @transform_1, window_bounds = array<i64: 128, 128>}, {transform_indices = @transform_2, window_bounds = array<i64: 128, 128>}, {transform_indices = @transform_3, window_bounds = array<i64: 128, 128>}, {transform_indices = @transform_4, window_bounds = array<i64: 1, 128>}, {transform_indices = @transform_5, window_bounds = array<i64: 1, 128>}, {transform_indices = @transform_6, window_bounds = array<i64: 1, 128>}, {transform_indices = @transform_7, window_bounds = array<i64: 16, 128>}]} {
    %c0 = arith.constant 0 : index
    %c0_0 = arith.constant 0 : index
    %0 = vector.load %arg4[%c0, %c0_0] : memref<128x128xf32, #tpu.memory_space<vmem>>, vector<128x128xf32>
    %c0_1 = arith.constant 0 : index
    %c0_2 = arith.constant 0 : index
    %1 = vector.load %arg6[%c0_1, %c0_2] : memref<128x128xf32, #tpu.memory_space<vmem>>, vector<128x128xf32>
    %c0_3 = arith.constant 0 : index
    %c0_4 = arith.constant 0 : index
    %2 = vector.load %arg5[%c0_3, %c0_4] : memref<128x128xf32, #tpu.memory_space<vmem>>, vector<128x128xf32>
    %cst = arith.constant 5.000000e-01 : f32
    %3 = vector.broadcast %cst : f32 to vector<128x128xf32>
    %4 = arith.mulf %3, %2 : vector<128x128xf32>
    %5 = math.exp %4 : vector<128x128xf32>
    %6 = arith.mulf %1, %5 : vector<128x128xf32>
    %7 = arith.addf %0, %6 : vector<128x128xf32>
    %c0_5 = arith.constant 0 : index
    %c0_6 = arith.constant 0 : index
    %8 = vector.load %arg3[%c0_5, %c0_6] : memref<16x128xf32, #tpu.memory_space<vmem>>, vector<16x128xf32>
    %9 = arith.truncf %8 : vector<16x128xf32> to vector<16x128xbf16>
    %10 = arith.truncf %7 : vector<128x128xf32> to vector<128x128xbf16>
    %cst_7 = arith.constant dense<0.000000e+00> : vector<16x128xf32>
    %11 = tpu.matmul %9, %10, %cst_7 {dimension_numbers = #tpu.dot_dimension_numbers<[1], [0], [0], [1], [0, 0, 1, 1], [], []>} : vector<16x128xbf16>, vector<128x128xbf16>, vector<16x128xf32> -> vector<16x128xf32>
    %c0_i32 = arith.constant 0 : i32
    %12 = arith.cmpi eq, %arg2, %c0_i32 : i32
    %13 = arith.extui %12 : i1 to i32
    %c0_i32_8 = arith.constant 0 : i32
    %14 = arith.cmpi ne, %13, %c0_i32_8 : i32
    scf.if %14 {
      %c0_13 = arith.constant 0 : index
      %c0_14 = arith.constant 0 : index
      %21 = vector.load %arg11[%c0_13, %c0_14] : memref<16x128xf32, #tpu.memory_space<vmem>>, vector<16x128xf32>
      tpu.vector_store %arg11[%c0_13, %c0_14], %11 {strides = array<i32>} : memref<16x128xf32, #tpu.memory_space<vmem>>, vector<16x128xf32>,
    } else {
    }
    %c0_i32_9 = arith.constant 0 : i32
    %15 = arith.cmpi sgt, %arg2, %c0_i32_9 : i32
    %16 = arith.extui %15 : i1 to i32
    %c0_i32_10 = arith.constant 0 : i32
    %17 = arith.cmpi ne, %16, %c0_i32_10 : i32
    scf.if %17 {
      %c0_13 = arith.constant 0 : index
      %c0_14 = arith.constant 0 : index
      %21 = vector.load %arg11[%c0_13, %c0_14] : memref<16x128xf32, #tpu.memory_space<vmem>>, vector<16x128xf32>
      %22 = arith.addf %21, %11 : vector<16x128xf32>
      %c0_15 = arith.constant 0 : index
      %c0_16 = arith.constant 0 : index
      %23 = vector.load %arg11[%c0_15, %c0_16] : memref<16x128xf32, #tpu.memory_space<vmem>>, vector<16x128xf32>
      tpu.vector_store %arg11[%c0_15, %c0_16], %22 {strides = array<i32>} : memref<16x128xf32, #tpu.memory_space<vmem>>, vector<16x128xf32>,
    } else {
    }
    %c0_i32_11 = arith.constant 0 : i32
    %18 = arith.cmpi eq, %arg2, %c0_i32_11 : i32
    %19 = arith.extui %18 : i1 to i32
    %c0_i32_12 = arith.constant 0 : i32
    %20 = arith.cmpi ne, %19, %c0_i32_12 : i32
    scf.if %20 {
      %c0_13 = arith.constant 0 : index
      %c0_14 = arith.constant 0 : index
      %21 = vector.load %arg7[%c0_13, %c0_14] : memref<1x128xf32, #tpu.memory_space<vmem>>, vector<1x128xf32>
      %c0_15 = arith.constant 0 : index
      %c0_16 = arith.constant 0 : index
      %22 = vector.load %arg9[%c0_15, %c0_16] : memref<1x128xf32, #tpu.memory_space<vmem>>, vector<1x128xf32>
      %c0_17 = arith.constant 0 : index
      %c0_18 = arith.constant 0 : index
      %23 = vector.load %arg8[%c0_17, %c0_18] : memref<1x128xf32, #tpu.memory_space<vmem>>, vector<1x128xf32>
      %cst_19 = arith.constant 5.000000e-01 : f32
      %24 = vector.broadcast %cst_19 : f32 to vector<1x128xf32>
      %25 = arith.mulf %24, %23 : vector<1x128xf32>
      %26 = math.exp %25 : vector<1x128xf32>
      %27 = arith.mulf %22, %26 : vector<1x128xf32>
      %28 = arith.addf %21, %27 : vector<1x128xf32>
      %c0_20 = arith.constant 0 : index
      %c0_21 = arith.constant 0 : index
      %29 = vector.load %arg11[%c0_20, %c0_21] : memref<16x128xf32, #tpu.memory_space<vmem>>, vector<16x128xf32>
      %30 = vector.broadcast %28 : vector<1x128xf32> to vector<16x128xf32>
      %31 = arith.addf %29, %30 : vector<16x128xf32>
      %c0_22 = arith.constant 0 : index
      %c0_23 = arith.constant 0 : index
      %32 = vector.load %arg10[%c0_22, %c0_23] : memref<16x128xf32, #tpu.memory_space<vmem>>, vector<16x128xf32>
      tpu.vector_store %arg10[%c0_22, %c0_23], %31 {strides = array<i32>} : memref<16x128xf32, #tpu.memory_space<vmem>>, vector<16x128xf32>,
    } else {
    }
    return
  }
  func.func @transform_0(%arg0: i32, %arg1: i32, %arg2: i32) -> (i32, i32) {
    %c0_i32 = arith.constant 0 : i32
    return %arg0, %arg2 : i32, i32
  }
  func.func @transform_1(%arg0: i32, %arg1: i32, %arg2: i32) -> (i32, i32) {
    %c0_i32 = arith.constant 0 : i32
    return %arg2, %arg1 : i32, i32
  }
  func.func @transform_2(%arg0: i32, %arg1: i32, %arg2: i32) -> (i32, i32) {
    %c0_i32 = arith.constant 0 : i32
    return %arg2, %arg1 : i32, i32
  }
  func.func @transform_3(%arg0: i32, %arg1: i32, %arg2: i32) -> (i32, i32) {
    %c0_i32 = arith.constant 0 : i32
    return %arg2, %arg1 : i32, i32
  }
  func.func @transform_4(%arg0: i32, %arg1: i32, %arg2: i32) -> (i32, i32) {
    %c0_i32 = arith.constant 0 : i32
    %c0_i32_0 = arith.constant 0 : i32
    return %c0_i32, %arg1 : i32, i32
  }
  func.func @transform_5(%arg0: i32, %arg1: i32, %arg2: i32) -> (i32, i32) {
    %c0_i32 = arith.constant 0 : i32
    %c0_i32_0 = arith.constant 0 : i32
    return %c0_i32, %arg1 : i32, i32
  }
  func.func @transform_6(%arg0: i32, %arg1: i32, %arg2: i32) -> (i32, i32) {
    %c0_i32 = arith.constant 0 : i32
    %c0_i32_0 = arith.constant 0 : i32
    return %c0_i32, %arg1 : i32, i32
  }
  func.func @transform_7(%arg0: i32, %arg1: i32, %arg2: i32) -> (i32, i32) {
    %c0_i32 = arith.constant 0 : i32
    return %arg0, %arg1 : i32, i32
  }
}

</mosaic_0001>

<llo_original>
// kernel: tpu_custom_call.1
$region0: #{tpu_custom_call.1}
  #allocation0 [shape = 'u32[]', space=smem, size = 0x4, offset = 0x4, fixed_abs, tag = 'smem constant byte address 0x4 - core index']
  #allocation1 [shape = 'u32[72,128]{1,0:T(1,128)}', space=vmem, size = 0x9000, scoped, tag = 'internal scratch']
  #allocation2 [shape = 'f32[16,128]{1,0:T(8,128)}', space=vmem, size = 0x2000, scoped, tag = 'scratch operand']
  %s0 = inlined_call_operand.hbm [shape: f32[16,128], index: 0, kind: input, shape index: {}]
  %s1 = inlined_call_operand.hbm [shape: f32[128,256], index: 1, kind: input, shape index: {}]
  %s2 = inlined_call_operand.hbm [shape: f32[128,256], index: 2, kind: input, shape index: {}]
  %s3 = inlined_call_operand.hbm [shape: f32[128,256], index: 3, kind: input, shape index: {}]
  %s4 = inlined_call_operand.vmem [shape: f32[1,256], index: 4, kind: input, shape index: {}]
  %s5 = inlined_call_operand.vmem [shape: f32[1,256], index: 5, kind: input, shape index: {}]
  %s6 = inlined_call_operand.hbm [shape: f32[1,256], index: 6, kind: input, shape index: {}]
  %s7 = inlined_call_operand.hbm [shape: f32[16,256], index: 7, kind: output, shape index: {}]
  %s8 = sld [smem:[#allocation0]]
  $region93: #{tpu_custom_call.1} parent=0
    _
  %s10 = ssub.s32 1, %s8
  %s11 = scalar_select 0, %s10, %s8
  $region1: #{tpu_custom_call.1} parent=0
    #allocation3 [shape = 'u8[8192]{0}', space=vmem, size = 0x2000, scoped, tag = 'input window, operand 0, single buffered']
    #allocation4 [shape = 's32[2]{0}', space=sflag, size = 0x8, scoped, tag = 'scoped memory for tpu_custom_call.1']
    #allocation5 [shape = 's32[2]{0}', space=sflag, size = 0x8, scoped, tag = 'scoped memory for tpu_custom_call.1']
    #allocation6 [shape = 'u8[131072]{0}', space=vmem, size = 0x20000, scoped, tag = 'input window, operand 1']
    #allocation7 [shape = 's32[2]{0}', space=sflag, size = 0x8, scoped, tag = 'scoped memory for tpu_custom_call.1']
    #allocation8 [shape = 'u8[131072]{0}', space=vmem, size = 0x20000, scoped, tag = 'input window, operand 2']
    #allocation9 [shape = 'u8[131072]{0}', space=vmem, size = 0x20000, scoped, tag = 'input window, operand 3']
    #allocation10 [shape = 's32[2]{0}', space=sflag, size = 0x8, scoped, tag = 'scoped memory for tpu_custom_call.1']
    #allocation11 [shape = 'u8[1024]{0}', space=vmem, size = 0x400, scoped, tag = 'input window, operand 6']
    #allocation12 [shape = 'u8[16384]{0}', space=vmem, size = 0x4000, scoped, tag = 'output window, operand 0']
    %12 = vsyncpa [#allocation4], 0
    %13 = vsyncpa [#allocation7], 0
    %s14 = scalar_lea.sflag [#allocation7], 1
    %15 = vsyncpa %s14, 0
    %16 = vsyncpa [#allocation10], 0
    %s17 = scalar_lea.sflag [#allocation10], 1
    %18 = vsyncpa %s17, 0
    %19 = vsyncpa [#allocation5], 0
    %s20 = scalar_lea.sflag [#allocation5], 1
    %21 = vsyncpa %s20, 0
    loop: start=0, step=1, limit=4
    $region2: #{tpu_custom_call.1} parent=1 // loop_pre_header
      _
    $region3: #{tpu_custom_call.1} parent=1 // loop_header
      %s23 = sphi 0, %s27
      %p24 = scmp.ge.s32.totalorder %s23, 4
      %s30 = sphi 0, %s49
      %s31 = sphi 0, %s45
      %s32 = sphi 0, %s41
      %s33 = sphi 0, %s30
      %s34 = sphi 0, %s31
      %s35 = sphi 0, %s32
      %s36 = sphi 0, %s33
      %s37 = sphi 0, %s34
      %s38 = sphi 0, %s35
      %s54 = sphi 0, %s56
      %s57 = sphi 0, %s54
      %s58 = sphi 0, %s57
      %s74 = sphi 0, %s58
      %s82 = sphi 0, %s84
      %s85 = sphi 0, %s82
      %s86 = sphi 0, %s85
      %s102 = sphi 0, %s86
      %s110 = sphi 0, %s112
      %s113 = sphi 0, %s110
      %s114 = sphi 0, %s113
      %s130 = sphi 0, %s114
      %s138 = sphi 0, %s140
      %s141 = sphi 0, %s138
      %s142 = sphi 0, %s141
      %s158 = sphi 0, %s142
      %s164 = sphi 0, %s166
      %s167 = sphi 0, %s164
      %s168 = sphi 0, %s167
      %s184 = sphi 0, %s168
      %s190 = sphi 0, %s192
      %s193 = sphi 0, %s190
      %s194 = sphi 0, %s193
      %s210 = sphi 0, %s194
      %s216 = sphi 0, %s218
      %s219 = sphi 0, %s216
      %s220 = sphi 0, %s219
      %s236 = sphi 0, %s220
      %s244 = sphi 0, %s246
      %s247 = sphi 0, %s244
      %s248 = sphi 0, %s247
      %s264 = sphi 0, %s248
    $region4: #{tpu_custom_call.1} parent=1 // loop_header_branch
      %26 = sbr.rel (%p24) target = $region8
    $region5: #{tpu_custom_call.1} parent=1 // loop_body
      %s28 = ssub.s32 %s23, 1
      %s29 = ssub.s32 %s23, 2
      %s39 = sadd.s32 1, %s32
      %p40 = scmp.ge.s32.totalorder %s39, 1
      %s41 = scalar_select %p40, 0, %s39
      %s42 = sadd.s32 1, %s31
      %s43 = scalar_select %p40, %s42, %s31
      %p44 = scmp.ge.s32.totalorder %s43, 2
      %s45 = scalar_select %p44, 0, %s43
      %s46 = sadd.s32 1, %s30
      %s47 = scalar_select %p44, %s46, %s30
      %p48 = scmp.ge.s32.totalorder %s47, 1
      %s49 = scalar_select %p48, 0, %s47
      %s50 = ssub.s32 %s30, %s49
      %s51 = ssub.s32 %s32, %s41
      %s52 = sor.u32 %s50, %s51
      %p53 = scmp.eq.s32.totalorder %s52, 0
      %s55 = sadd.s32 %s54, 1
      %s56 = scalar_select %p53, %s54, %s55
      %p59 = pneg %p53
      %p60 = scmp.eq.s32.totalorder %s23, 1
      %p61 = por %p59, %p60
      %p62 = scmp.ne.s32.totalorder %s54, %s57
      %p63 = scmp.eq.s32.totalorder %s23, 0
      %p64 = por %p62, %p63
      %p65 = scmp.ne.s32.totalorder %s54, %s57
      %p66 = scmp.eq.s32.totalorder %s28, 1
      %p67 = por %p65, %p66
      %p68 = scmp.ne.s32.totalorder %s57, %s58
      %p69 = scmp.eq.s32.totalorder %s28, 0
      %p70 = por %p68, %p69
      %p71 = scmp.ne.s32.totalorder %s57, %s58
      %p72 = scmp.eq.s32.totalorder %s29, 1
      %p73 = por %p71, %p72
      %p75 = scmp.ne.s32.totalorder %s58, %s74
      %p76 = scmp.eq.s32.totalorder %s29, 0
      %p77 = por %p75, %p76
      %s78 = ssub.s32 %s32, %s41
      %s79 = ssub.s32 %s31, %s45
      %s80 = sor.u32 %s78, %s79
      %p81 = scmp.eq.s32.totalorder %s80, 0
      %s83 = sadd.s32 %s82, 1
      %s84 = scalar_select %p81, %s82, %s83
      %p87 = pneg %p81
      %p88 = scmp.eq.s32.totalorder %s23, 1
      %p89 = por %p87, %p88
      %p90 = scmp.ne.s32.totalorder %s82, %s85
      %p91 = scmp.eq.s32.totalorder %s23, 0
      %p92 = por %p90, %p91
      %p93 = scmp.ne.s32.totalorder %s82, %s85
      %p94 = scmp.eq.s32.totalorder %s28, 1
      %p95 = por %p93, %p94
      %p96 = scmp.ne.s32.totalorder %s85, %s86
      %p97 = scmp.eq.s32.totalorder %s28, 0
      %p98 = por %p96, %p97
      %p99 = scmp.ne.s32.totalorder %s85, %s86
      %p100 = scmp.eq.s32.totalorder %s29, 1
      %p101 = por %p99, %p100
      %p103 = scmp.ne.s32.totalorder %s86, %s102
      %p104 = scmp.eq.s32.totalorder %s29, 0
      %p105 = por %p103, %p104
      %s106 = ssub.s32 %s32, %s41
      %s107 = ssub.s32 %s31, %s45
      %s108 = sor.u32 %s106, %s107
      %p109 = scmp.eq.s32.totalorder %s108, 0
      %s111 = sadd.s32 %s110, 1
      %s112 = scalar_select %p109, %s110, %s111
      %p115 = pneg %p109
      %p116 = scmp.eq.s32.totalorder %s23, 1
      %p117 = por %p115, %p116
      %p118 = scmp.ne.s32.totalorder %s110, %s113
      %p119 = scmp.eq.s32.totalorder %s23, 0
      %p120 = por %p118, %p119
      %p121 = scmp.ne.s32.totalorder %s110, %s113
      %p122 = scmp.eq.s32.totalorder %s28, 1
      %p123 = por %p121, %p122
      %p124 = scmp.ne.s32.totalorder %s113, %s114
      %p125 = scmp.eq.s32.totalorder %s28, 0
      %p126 = por %p124, %p125
      %p127 = scmp.ne.s32.totalorder %s113, %s114
      %p128 = scmp.eq.s32.totalorder %s29, 1
      %p129 = por %p127, %p128
      %p131 = scmp.ne.s32.totalorder %s114, %s130
      %p132 = scmp.eq.s32.totalorder %s29, 0
      %p133 = por %p131, %p132
      %s134 = ssub.s32 %s32, %s41
      %s135 = ssub.s32 %s31, %s45
      %s136 = sor.u32 %s134, %s135
      %p137 = scmp.eq.s32.totalorder %s136, 0
      %s139 = sadd.s32 %s138, 1
      %s140 = scalar_select %p137, %s138, %s139
      %p143 = pneg %p137
      %p144 = scmp.eq.s32.totalorder %s23, 1
      %p145 = por %p143, %p144
      %p146 = scmp.ne.s32.totalorder %s138, %s141
      %p147 = scmp.eq.s32.totalorder %s23, 0
      %p148 = por %p146, %p147
      %p149 = scmp.ne.s32.totalorder %s138, %s141
      %p150 = scmp.eq.s32.totalorder %s28, 1
      %p151 = por %p149, %p150
      %p152 = scmp.ne.s32.totalorder %s141, %s142
      %p153 = scmp.eq.s32.totalorder %s28, 0
      %p154 = por %p152, %p153
      %p155 = scmp.ne.s32.totalorder %s141, %s142
      %p156 = scmp.eq.s32.totalorder %s29, 1
      %p157 = por %p155, %p156
      %p159 = scmp.ne.s32.totalorder %s142, %s158
      %p160 = scmp.eq.s32.totalorder %s29, 0
      %p161 = por %p159, %p160
      %s162 = ssub.s32 %s31, %s45
      %p163 = scmp.eq.s32.totalorder %s162, 0
      %s165 = sadd.s32 %s164, 1
      %s166 = scalar_select %p163, %s164, %s165
      %p169 = pneg %p163
      %p170 = scmp.eq.s32.totalorder %s23, 1
      %p171 = por %p169, %p170
      %p172 = scmp.ne.s32.totalorder %s164, %s167
      %p173 = scmp.eq.s32.totalorder %s23, 0
      %p174 = por %p172, %p173
      %p175 = scmp.ne.s32.totalorder %s164, %s167
      %p176 = scmp.eq.s32.totalorder %s28, 1
      %p177 = por %p175, %p176
      %p178 = scmp.ne.s32.totalorder %s167, %s168
      %p179 = scmp.eq.s32.totalorder %s28, 0
      %p180 = por %p178, %p179
      %p181 = scmp.ne.s32.totalorder %s167, %s168
      %p182 = scmp.eq.s32.totalorder %s29, 1
      %p183 = por %p181, %p182
      %p185 = scmp.ne.s32.totalorder %s168, %s184
      %p186 = scmp.eq.s32.totalorder %s29, 0
      %p187 = por %p185, %p186
      %s188 = ssub.s32 %s31, %s45
      %p189 = scmp.eq.s32.totalorder %s188, 0
      %s191 = sadd.s32 %s190, 1
      %s192 = scalar_select %p189, %s190, %s191
      %p195 = pneg %p189
      %p196 = scmp.eq.s32.totalorder %s23, 1
      %p197 = por %p195, %p196
      %p198 = scmp.ne.s32.totalorder %s190, %s193
      %p199 = scmp.eq.s32.totalorder %s23, 0
      %p200 = por %p198, %p199
      %p201 = scmp.ne.s32.totalorder %s190, %s193
      %p202 = scmp.eq.s32.totalorder %s28, 1
      %p203 = por %p201, %p202
      %p204 = scmp.ne.s32.totalorder %s193, %s194
      %p205 = scmp.eq.s32.totalorder %s28, 0
      %p206 = por %p204, %p205
      %p207 = scmp.ne.s32.totalorder %s193, %s194
      %p208 = scmp.eq.s32.totalorder %s29, 1
      %p209 = por %p207, %p208
      %p211 = scmp.ne.s32.totalorder %s194, %s210
      %p212 = scmp.eq.s32.totalorder %s29, 0
      %p213 = por %p211, %p212
      %s214 = ssub.s32 %s31, %s45
      %p215 = scmp.eq.s32.totalorder %s214, 0
      %s217 = sadd.s32 %s216, 1
      %s218 = scalar_select %p215, %s216, %s217
      %p221 = pneg %p215
      %p222 = scmp.eq.s32.totalorder %s23, 1
      %p223 = por %p221, %p222
      %p224 = scmp.ne.s32.totalorder %s216, %s219
      %p225 = scmp.eq.s32.totalorder %s23, 0
      %p226 = por %p224, %p225
      %p227 = scmp.ne.s32.totalorder %s216, %s219
      %p228 = scmp.eq.s32.totalorder %s28, 1
      %p229 = por %p227, %p228
      %p230 = scmp.ne.s32.totalorder %s219, %s220
      %p231 = scmp.eq.s32.totalorder %s28, 0
      %p232 = por %p230, %p231
      %p233 = scmp.ne.s32.totalorder %s219, %s220
      %p234 = scmp.eq.s32.totalorder %s29, 1
      %p235 = por %p233, %p234
      %p237 = scmp.ne.s32.totalorder %s220, %s236
      %p238 = scmp.eq.s32.totalorder %s29, 0
      %p239 = por %p237, %p238
      %s240 = ssub.s32 %s30, %s49
      %s241 = ssub.s32 %s31, %s45
      %s242 = sor.u32 %s240, %s241
      %p243 = scmp.eq.s32.totalorder %s242, 0
      %s245 = sadd.s32 %s244, 1
      %s246 = scalar_select %p243, %s244, %s245
      %p249 = pneg %p243
      %p250 = scmp.eq.s32.totalorder %s23, 1
      %p251 = por %p249, %p250
      %p252 = scmp.ne.s32.totalorder %s244, %s247
      %p253 = scmp.eq.s32.totalorder %s23, 0
      %p254 = por %p252, %p253
      %p255 = scmp.ne.s32.totalorder %s244, %s247
      %p256 = scmp.eq.s32.totalorder %s28, 1
      %p257 = por %p255, %p256
      %p258 = scmp.ne.s32.totalorder %s247, %s248
      %p259 = scmp.eq.s32.totalorder %s28, 0
      %p260 = por %p258, %p259
      %p261 = scmp.ne.s32.totalorder %s247, %s248
      %p262 = scmp.eq.s32.totalorder %s29, 1
      %p263 = por %p261, %p262
      %p265 = scmp.ne.s32.totalorder %s248, %s264
      %p266 = scmp.eq.s32.totalorder %s29, 0
      %p267 = por %p265, %p266
      %p268 = scmp.le.s32.totalorder 1, %s23
      %p269 = scmp.lt.s32.totalorder %s23, 3
      %p270 = pnand %p268, %p269
      %p271 = pneg %p270
      // Predicated region
      $region9: #{tpu_custom_call.1} parent=5 // pred_check
        _
      $region10: #{tpu_custom_call.1} parent=5 // pred_check_branch
        %273 = sbr.rel (%p270) target = $region12
      $region11: #{tpu_custom_call.1} parent=5 // pred_region
        %s274 = ssub.s32 %s23, 1
        // Predicated region
        $region13: #{tpu_custom_call.1} parent=11 // pred_check
          %p275 = pneg %p70
        $region14: #{tpu_custom_call.1} parent=11 // pred_check_branch
          %277 = sbr.rel (%p275) target = $region16
        $region15: #{tpu_custom_call.1} parent=11 // pred_region
          %s278 = smul.u32 2, %s33
          %280 = vsyncadd [#allocation4], 0
          %s281 = sadd.s32 %s35, %s278
          %s282 = smul.addr %s281, 8
          %s283 = scalar_lea.hbm %s0, %s282
          %s284 = sshll.u32 %s283, 4
          %s285 = int_to_ptr.hbm [resolvable:$true] %s284
          %s286 = sshll.u32 [#allocation3], 4
          %s287 = int_to_ptr.vmem [resolvable:$true] %s286
          %292 = dma.hbm_to_vmem [thread:$0]  %s285, 256, %s287, [#allocation4], 128, 128, 8
        $region16: #{tpu_custom_call.1} parent=11 // pred_fallthru
          _
      $region12: #{tpu_custom_call.1} parent=5 // pred_fallthru
        _
      %p293 = scmp.lt.s32.totalorder %s23, 2
      // Predicated region
      $region17: #{tpu_custom_call.1} parent=5 // pred_check
        %p294 = pneg %p293
      $region18: #{tpu_custom_call.1} parent=5 // pred_check_branch
        %296 = sbr.rel (%p294) target = $region20
      $region19: #{tpu_custom_call.1} parent=5 // pred_region
        // Predicated region
        $region21: #{tpu_custom_call.1} parent=19 // pred_check
          %p297 = pneg %p92
        $region22: #{tpu_custom_call.1} parent=19 // pred_check_branch
          %299 = sbr.rel (%p297) target = $region24
        $region23: #{tpu_custom_call.1} parent=19 // pred_region
          %s300 = sand.u32 %s23, 1
          %s301 = scalar_lea.sflag [#allocation7], %s300
          %s302 = sand.u32 %s82, 1
          %s303 = smul.addr %s302, 128
          %s304 = scalar_lea.vmem [#allocation6], %s303
          %s305 = smul.u32 16, %s32
          %307 = vsyncadd %s301, 0
          %s308 = smul.addr %s305, 2
          %s309 = sadd.s32 %s31, %s308
          %s310 = smul.addr %s309, 8
          %s311 = scalar_lea.hbm %s1, %s310
          %s312 = sshll.u32 %s311, 4
          %s313 = int_to_ptr.hbm [resolvable:$true] %s312
          %s314 = sshll.u32 %s304, 4
          %s315 = int_to_ptr.vmem [resolvable:$true] %s314
          %320 = dma.hbm_to_vmem [thread:$0]  %s313, 2048, %s315, %s301, 256, 128, 8
        $region24: #{tpu_custom_call.1} parent=19 // pred_fallthru
          _
        // Predicated region
        $region25: #{tpu_custom_call.1} parent=19 // pred_check
          %p321 = pneg %p120
        $region26: #{tpu_custom_call.1} parent=19 // pred_check_branch
          %323 = sbr.rel (%p321) target = $region28
        $region27: #{tpu_custom_call.1} parent=19 // pred_region
          %s324 = sand.u32 %s23, 1
          %s325 = scalar_lea.sflag [#allocation7], %s324
          %s326 = sand.u32 %s110, 1
          %s327 = smul.addr %s326, 128
          %s328 = scalar_lea.vmem [#allocation8], %s327
          %s329 = smul.u32 16, %s32
          %331 = vsyncadd %s325, 0
          %s332 = smul.addr %s329, 2
          %s333 = sadd.s32 %s31, %s332
          %s334 = smul.addr %s333, 8
          %s335 = scalar_lea.hbm %s2, %s334
          %s336 = sshll.u32 %s335, 4
          %s337 = int_to_ptr.hbm [resolvable:$true] %s336
          %s338 = sshll.u32 %s328, 4
          %s339 = int_to_ptr.vmem [resolvable:$true] %s338
          %344 = dma.hbm_to_vmem [thread:$0]  %s337, 2048, %s339, %s325, 256, 128, 8
        $region28: #{tpu_custom_call.1} parent=19 // pred_fallthru
          _
        // Predicated region
        $region29: #{tpu_custom_call.1} parent=19 // pred_check
          %p345 = pneg %p148
        $region30: #{tpu_custom_call.1} parent=19 // pred_check_branch
          %347 = sbr.rel (%p345) target = $region32
        $region31: #{tpu_custom_call.1} parent=19 // pred_region
          %s348 = sand.u32 %s23, 1
          %s349 = scalar_lea.sflag [#allocation10], %s348
          %s350 = sand.u32 %s138, 1
          %s351 = smul.addr %s350, 128
          %s352 = scalar_lea.vmem [#allocation9], %s351
          %s353 = smul.u32 16, %s32
          %355 = vsyncadd %s349, 0
          %s356 = smul.addr %s353, 2
          %s357 = sadd.s32 %s31, %s356
          %s358 = smul.addr %s357, 8
          %s359 = scalar_lea.hbm %s3, %s358
          %s360 = sshll.u32 %s359, 4
          %s361 = int_to_ptr.hbm [resolvable:$true] %s360
          %s362 = sshll.u32 %s352, 4
          %s363 = int_to_ptr.vmem [resolvable:$true] %s362
          %368 = dma.hbm_to_vmem [thread:$0]  %s361, 2048, %s363, %s349, 256, 128, 8
        $region32: #{tpu_custom_call.1} parent=19 // pred_fallthru
          _
        // Predicated region
        $region33: #{tpu_custom_call.1} parent=19 // pred_check
          %p369 = pneg %p174
        $region34: #{tpu_custom_call.1} parent=19 // pred_check_branch
          %371 = sbr.rel (%p369) target = $region36
        $region35: #{tpu_custom_call.1} parent=19 // pred_region
          %p372 = scmp.lt.s32.totalorder %s31, 1
          %s373 = scalar_select %p372, %s31, 1
          %s374 = scalar_lea.vmem %s4, %s373
        $region36: #{tpu_custom_call.1} parent=19 // pred_fallthru
          _
        // Predicated region
        $region37: #{tpu_custom_call.1} parent=19 // pred_check
          %p375 = pneg %p200
        $region38: #{tpu_custom_call.1} parent=19 // pred_check_branch
          %377 = sbr.rel (%p375) target = $region40
        $region39: #{tpu_custom_call.1} parent=19 // pred_region
          %p378 = scmp.lt.s32.totalorder %s31, 1
          %s379 = scalar_select %p378, %s31, 1
          %s380 = scalar_lea.vmem %s5, %s379
        $region40: #{tpu_custom_call.1} parent=19 // pred_fallthru
          _
        // Predicated region
        $region41: #{tpu_custom_call.1} parent=19 // pred_check
          %p381 = pneg %p226
        $region42: #{tpu_custom_call.1} parent=19 // pred_check_branch
          %383 = sbr.rel (%p381) target = $region44
        $region43: #{tpu_custom_call.1} parent=19 // pred_region
          %s384 = sand.u32 %s23, 1
          %s385 = scalar_lea.sflag [#allocation10], %s384
          %s386 = sand.u32 %s216, 1
          %s387 = scalar_lea.vmem [#allocation11], %s386
          %389 = vsyncadd %s385, 0
          %s390 = scalar_lea.hbm %s6, %s31
          %s392 = sshll.u32 %s390, 4
          %s393 = int_to_ptr.hbm [resolvable:$true] %s392
          %s394 = sshll.u32 %s387, 4
          %s395 = int_to_ptr.vmem [resolvable:$true] %s394
          %397 = dma.hbm_to_vmem [thread:$0]  %s393, 16, %s395, %s385
        $region44: #{tpu_custom_call.1} parent=19 // pred_fallthru
          _
      $region20: #{tpu_custom_call.1} parent=5 // pred_fallthru
        _
      %p398 = scmp.le.s32.totalorder 1, %s23
      %p399 = scmp.lt.s32.totalorder %s23, 3
      %p400 = pnand %p398, %p399
      %p401 = pneg %p400
      // Predicated region
      $region45: #{tpu_custom_call.1} parent=5 // pred_check
        _
      $region46: #{tpu_custom_call.1} parent=5 // pred_check_branch
        %403 = sbr.rel (%p400) target = $region48
      $region47: #{tpu_custom_call.1} parent=5 // pred_region
        %s404 = ssub.s32 %s23, 1
        // Predicated region
        $region49: #{tpu_custom_call.1} parent=47 // pred_check
          %p405 = pneg %p70
        $region50: #{tpu_custom_call.1} parent=47 // pred_check_branch
          %407 = sbr.rel (%p405) target = $region52
        $region51: #{tpu_custom_call.1} parent=47 // pred_region
          %409 = dma.done [#allocation4], 256
        $region52: #{tpu_custom_call.1} parent=47 // pred_fallthru
          _
        %s410 = sand.u32 %s28, 1
        %s411 = scalar_lea.sflag [#allocation7], %s410
        %s412 = sand.u32 %s85, 1
        %s413 = smul.addr %s412, 128
        %s414 = scalar_lea.vmem [#allocation6], %s413
        // Predicated region
        $region53: #{tpu_custom_call.1} parent=47 // pred_check
          %p415 = pneg %p98
        $region54: #{tpu_custom_call.1} parent=47 // pred_check_branch
          %417 = sbr.rel (%p415) target = $region56
        $region55: #{tpu_custom_call.1} parent=47 // pred_region
          %419 = dma.done %s411, 2048
        $region56: #{tpu_custom_call.1} parent=47 // pred_fallthru
          _
        %s420 = sand.u32 %s28, 1
        %s421 = scalar_lea.sflag [#allocation7], %s420
        %s422 = sand.u32 %s113, 1
        %s423 = smul.addr %s422, 128
        %s424 = scalar_lea.vmem [#allocation8], %s423
        // Predicated region
        $region57: #{tpu_custom_call.1} parent=47 // pred_check
          %p425 = pneg %p126
        $region58: #{tpu_custom_call.1} parent=47 // pred_check_branch
          %427 = sbr.rel (%p425) target = $region60
        $region59: #{tpu_custom_call.1} parent=47 // pred_region
          %429 = dma.done %s421, 2048
        $region60: #{tpu_custom_call.1} parent=47 // pred_fallthru
          _
        %s430 = sand.u32 %s28, 1
        %s431 = scalar_lea.sflag [#allocation10], %s430
        %s432 = sand.u32 %s141, 1
        %s433 = smul.addr %s432, 128
        %s434 = scalar_lea.vmem [#allocation9], %s433
        // Predicated region
        $region61: #{tpu_custom_call.1} parent=47 // pred_check
          %p435 = pneg %p154
        $region62: #{tpu_custom_call.1} parent=47 // pred_check_branch
          %437 = sbr.rel (%p435) target = $region64
        $region63: #{tpu_custom_call.1} parent=47 // pred_region
          %439 = dma.done %s431, 2048
        $region64: #{tpu_custom_call.1} parent=47 // pred_fallthru
          _
        %s440 = sand.u32 %s28, 1
        %s441 = scalar_lea.sflag [#allocation10], %s440
        %s442 = sand.u32 %s219, 1
        %s443 = scalar_lea.vmem [#allocation11], %s442
        // Predicated region
        $region65: #{tpu_custom_call.1} parent=47 // pred_check
          %p444 = pneg %p232
        $region66: #{tpu_custom_call.1} parent=47 // pred_check_branch
          %446 = sbr.rel (%p444) target = $region68
        $region67: #{tpu_custom_call.1} parent=47 // pred_region
          %448 = dma.done %s441, 16
        $region68: #{tpu_custom_call.1} parent=47 // pred_fallthru
          _
        %p449 = pneg %p70
        %p450 = pneg %p67
        %s451 = sand.u32 %s28, 1
        %s452 = scalar_lea.sflag [#allocation7], %s451
        %s453 = sand.u32 %s85, 1
        %s454 = smul.addr %s453, 128
        %s455 = scalar_lea.vmem [#allocation6], %s454
        %p456 = pneg %p98
        %p457 = pneg %p95
        %s458 = sand.u32 %s28, 1
        %s459 = scalar_lea.sflag [#allocation7], %s458
        %s460 = sand.u32 %s113, 1
        %s461 = smul.addr %s460, 128
        %s462 = scalar_lea.vmem [#allocation8], %s461
        %p463 = pneg %p126
        %p464 = pneg %p123
        %s465 = sand.u32 %s28, 1
        %s466 = scalar_lea.sflag [#allocation10], %s465
        %s467 = sand.u32 %s141, 1
        %s468 = smul.addr %s467, 128
        %s469 = scalar_lea.vmem [#allocation9], %s468
        %p470 = pneg %p154
        %p471 = pneg %p151
        %p472 = scmp.lt.s32.totalorder %s34, 1
        %s473 = scalar_select %p472, %s34, 1
        %s474 = scalar_lea.vmem %s4, %s473
        %p475 = pneg %p180
        %p476 = pneg %p177
        %p477 = scmp.lt.s32.totalorder %s34, 1
        %s478 = scalar_select %p477, %s34, 1
        %s479 = scalar_lea.vmem %s5, %s478
        %p480 = pneg %p206
        %p481 = pneg %p203
        %s482 = sand.u32 %s28, 1
        %s483 = scalar_lea.sflag [#allocation10], %s482
        %s484 = sand.u32 %s219, 1
        %s485 = scalar_lea.vmem [#allocation11], %s484
        %p486 = pneg %p232
        %p487 = pneg %p229
        %p488 = pneg %p260
        %p489 = pneg %p257
        %s490 = sand.u32 %s247, 1
        %s491 = scalar_lea.sflag [#allocation5], %s490
        %s492 = sand.u32 %s247, 1
        %s493 = smul.addr %s492, 16
        %s494 = scalar_lea.vmem [#allocation12], %s493
        %s495 = smul.u32 2, %s33
        %s496 = smul.u32 16, %s35
        %s497 = smul.u32 16, %s35
        %s498 = smul.u32 16, %s35
        %p499 = scmp.lt.s32.totalorder %s34, 1
        %s500 = scalar_select %p499, %s34, 1
        %s501 = scalar_lea.vmem %s4, %s500
        %p502 = scmp.lt.s32.totalorder %s34, 1
        %s503 = scalar_select %p502, %s34, 1
        %s504 = scalar_lea.vmem %s5, %s503
        %s505 = smul.u32 2, %s33
        %v506 = vld [vmem:[%s414] sm:$0xff]
        %v507 = vld [vmem:[%s414 + $0x8] sm:$0xff]
        %v508 = vld [vmem:[%s414 + $0x10] sm:$0xff]
        %v509 = vld [vmem:[%s414 + $0x18] sm:$0xff]
        %v510 = vld [vmem:[%s414 + $0x20] sm:$0xff]
        %v511 = vld [vmem:[%s414 + $0x28] sm:$0xff]
        %v512 = vld [vmem:[%s414 + $0x30] sm:$0xff]
        %v513 = vld [vmem:[%s414 + $0x38] sm:$0xff]
        %v514 = vld [vmem:[%s414 + $0x40] sm:$0xff]
        %v515 = vld [vmem:[%s414 + $0x48] sm:$0xff]
        %v516 = vld [vmem:[%s414 + $0x50] sm:$0xff]
        %v517 = vld [vmem:[%s414 + $0x58] sm:$0xff]
        %v518 = vld [vmem:[%s414 + $0x60] sm:$0xff]
        %v519 = vld [vmem:[%s414 + $0x68] sm:$0xff]
        %v520 = vld [vmem:[%s414 + $0x70] sm:$0xff]
        %v521 = vld [vmem:[%s414 + $0x78] sm:$0xff]
        %v522 = vld [vmem:[%s434] sm:$0xff]
        %v523 = vld [vmem:[%s434 + $0x8] sm:$0xff]
        %v524 = vld [vmem:[%s434 + $0x10] sm:$0xff]
        %v525 = vld [vmem:[%s434 + $0x18] sm:$0xff]
        %v526 = vld [vmem:[%s434 + $0x20] sm:$0xff]
        %v527 = vld [vmem:[%s434 + $0x28] sm:$0xff]
        %v528 = vld [vmem:[%s434 + $0x30] sm:$0xff]
        %v529 = vld [vmem:[%s434 + $0x38] sm:$0xff]
        %v530 = vld [vmem:[%s434 + $0x40] sm:$0xff]
        %v531 = vld [vmem:[%s434 + $0x48] sm:$0xff]
        %v532 = vld [vmem:[%s434 + $0x50] sm:$0xff]
        %v533 = vld [vmem:[%s434 + $0x58] sm:$0xff]
        %v534 = vld [vmem:[%s434 + $0x60] sm:$0xff]
        %v535 = vld [vmem:[%s434 + $0x68] sm:$0xff]
        %v536 = vld [vmem:[%s434 + $0x70] sm:$0xff]
        %v537 = vld [vmem:[%s434 + $0x78] sm:$0xff]
        %v538 = vld [vmem:[%s424] sm:$0xff]
        %v539 = vld [vmem:[%s424 + $0x8] sm:$0xff]
        %v540 = vld [vmem:[%s424 + $0x10] sm:$0xff]
        %v541 = vld [vmem:[%s424 + $0x18] sm:$0xff]
        %v542 = vld [vmem:[%s424 + $0x20] sm:$0xff]
        %v543 = vld [vmem:[%s424 + $0x28] sm:$0xff]
        %v544 = vld [vmem:[%s424 + $0x30] sm:$0xff]
        %v545 = vld [vmem:[%s424 + $0x38] sm:$0xff]
        %v546 = vld [vmem:[%s424 + $0x40] sm:$0xff]
        %v547 = vld [vmem:[%s424 + $0x48] sm:$0xff]
        %v548 = vld [vmem:[%s424 + $0x50] sm:$0xff]
        %v549 = vld [vmem:[%s424 + $0x58] sm:$0xff]
        %v550 = vld [vmem:[%s424 + $0x60] sm:$0xff]
        %v551 = vld [vmem:[%s424 + $0x68] sm:$0xff]
        %v552 = vld [vmem:[%s424 + $0x70] sm:$0xff]
        %v553 = vld [vmem:[%s424 + $0x78] sm:$0xff]
        %v554 = vmul.f32 %v538, 0.5
        %v555 = vmul.f32 %v539, 0.5
        %v556 = vmul.f32 %v540, 0.5
        %v557 = vmul.f32 %v541, 0.5
        %v558 = vmul.f32 %v542, 0.5
        %v559 = vmul.f32 %v543, 0.5
        %v560 = vmul.f32 %v544, 0.5
        %v561 = vmul.f32 %v545, 0.5
        %v562 = vmul.f32 %v546, 0.5
        %v563 = vmul.f32 %v547, 0.5
        %v564 = vmul.f32 %v548, 0.5
        %v565 = vmul.f32 %v549, 0.5
        %v566 = vmul.f32 %v550, 0.5
        %v567 = vmul.f32 %v551, 0.5
        %v568 = vmul.f32 %v552, 0.5
        %v569 = vmul.f32 %v553, 0.5
        %v570 = vmul.f32 %v554, 1.442695
        %v571 = vpow.pop %v570
        %v572 = vmul.f32 %v555, 1.442695
        %v573 = vpow.pop %v572
        %v574 = vmul.f32 %v556, 1.442695
        %v575 = vpow.pop %v574
        %v576 = vmul.f32 %v557, 1.442695
        %v577 = vpow.pop %v576
        %v578 = vmul.f32 %v558, 1.442695
        %v579 = vpow.pop %v578
        %v580 = vmul.f32 %v559, 1.442695
        %v581 = vpow.pop %v580
        %v582 = vmul.f32 %v560, 1.442695
        %v583 = vpow.pop %v582
        %v584 = vmul.f32 %v561, 1.442695
        %v585 = vpow.pop %v584
        %v586 = vmul.f32 %v562, 1.442695
        %v587 = vpow.pop %v586
        %v588 = vmul.f32 %v563, 1.442695
        %v589 = vpow.pop %v588
        %v590 = vmul.f32 %v564, 1.442695
        %v591 = vpow.pop %v590
        %v592 = vmul.f32 %v565, 1.442695
        %v593 = vpow.pop %v592
        %v594 = vmul.f32 %v566, 1.442695
        %v595 = vpow.pop %v594
        %v596 = vmul.f32 %v567, 1.442695
        %v597 = vpow.pop %v596
        %v598 = vmul.f32 %v568, 1.442695
        %v599 = vpow.pop %v598
        %v600 = vmul.f32 %v569, 1.442695
        %v601 = vpow.pop %v600
        %v602 = vmul.f32 %v522, %v571
        %v603 = vmul.f32 %v523, %v573
        %v604 = vmul.f32 %v524, %v575
        %v605 = vmul.f32 %v525, %v577
        %v606 = vmul.f32 %v526, %v579
        %v607 = vmul.f32 %v527, %v581
        %v608 = vmul.f32 %v528, %v583
        %v609 = vmul.f32 %v529, %v585
        %v610 = vmul.f32 %v530, %v587
        %v611 = vmul.f32 %v531, %v589
        %v612 = vmul.f32 %v532, %v591
        %v613 = vmul.f32 %v533, %v593
        %v614 = vmul.f32 %v534, %v595
        %v615 = vmul.f32 %v535, %v597
        %v616 = vmul.f32 %v536, %v599
        %v617 = vmul.f32 %v537, %v601
        %v618 = vadd.f32 %v506, %v602
        %v619 = vadd.f32 %v507, %v603
        %v620 = vadd.f32 %v508, %v604
        %v621 = vadd.f32 %v509, %v605
        %v622 = vadd.f32 %v510, %v606
        %v623 = vadd.f32 %v511, %v607
        %v624 = vadd.f32 %v512, %v608
        %v625 = vadd.f32 %v513, %v609
        %v626 = vadd.f32 %v514, %v610
        %v627 = vadd.f32 %v515, %v611
        %v628 = vadd.f32 %v516, %v612
        %v629 = vadd.f32 %v517, %v613
        %v630 = vadd.f32 %v518, %v614
        %v631 = vadd.f32 %v519, %v615
        %v632 = vadd.f32 %v520, %v616
        %v633 = vadd.f32 %v521, %v617
        %v634 = vld [vmem:[#allocation3] sm:$0xff]
        %v635 = vld [vmem:[#allocation3 + $0x8] sm:$0xff]
        %v636 = vpack.c.bf16 %v635, %v634
        %v637 = vpack.c.bf16 %v619, %v618
        %v638 = vpack.c.bf16 %v621, %v620
        %v639 = vpack.c.bf16 %v623, %v622
        %v640 = vpack.c.bf16 %v625, %v624
        %v641 = vpack.c.bf16 %v627, %v626
        %v642 = vpack.c.bf16 %v629, %v628
        %v643 = vpack.c.bf16 %v631, %v630
        %v644 = vpack.c.bf16 %v633, %v632
        %645 = vmatpush.bf16.msra.mxu0 %v644
        %646 = vmatpush.bf16.msra.mxu0 %v643
        %647 = vmatpush.bf16.msra.mxu0 %v642
        %648 = vmatpush.bf16.msra.mxu0 %v641
        %649 = vmatpush.bf16.msra.mxu0 %v640
        %650 = vmatpush.bf16.msra.mxu0 %v639
        %651 = vmatpush.bf16.msra.mxu0 %v638
        %652 = vmatpush.bf16.msra.mxu0 %v637
        %653 = vmatmul.bf16.gmra.mxu0 %v636
        %v654 = vpop.f32.mrf.mxu0
        %v655 = vadd.f32 0.0, %v654
        %v656 = vpop.f32.mrf.mxu0
        %v657 = vadd.f32 0.0, %v656
        %658 = vdwg.mxu0
        %p659 = scmp.eq.s32.totalorder %s35, 0
        // Predicated region
        $region69: #{tpu_custom_call.1} parent=47 // pred_check
          %p660 = pneg %p659
        $region70: #{tpu_custom_call.1} parent=47 // pred_check_branch
          %662 = sbr.rel (%p660) target = $region72
        $region71: #{tpu_custom_call.1} parent=47 // pred_region
          %663 = vst [vmem:[#allocation2] sm:$0xff] %v655
          %664 = vst [vmem:[#allocation2 + $0x8] sm:$0xff] %v657
        $region72: #{tpu_custom_call.1} parent=47 // pred_fallthru
          _
        %p665 = scmp.gt.s32.totalorder %s35, 0
        // Predicated region
        $region73: #{tpu_custom_call.1} parent=47 // pred_check
          %p666 = pneg %p665
        $region74: #{tpu_custom_call.1} parent=47 // pred_check_branch
          %668 = sbr.rel (%p666) target = $region76
        $region75: #{tpu_custom_call.1} parent=47 // pred_region
          %v669 = vld [vmem:[#allocation2] sm:$0xff]
          %v670 = vld [vmem:[#allocation2 + $0x8] sm:$0xff]
          %v671 = vadd.f32 %v669, %v655
          %v672 = vadd.f32 %v670, %v657
          %673 = vst [vmem:[#allocation2] sm:$0xff] %v671
          %674 = vst [vmem:[#allocation2 + $0x8] sm:$0xff] %v672
        $region76: #{tpu_custom_call.1} parent=47 // pred_fallthru
          _
        // Predicated region
        $region77: #{tpu_custom_call.1} parent=47 // pred_check
          %p675 = pneg %p659
        $region78: #{tpu_custom_call.1} parent=47 // pred_check_branch
          %677 = sbr.rel (%p675) target = $region80
        $region79: #{tpu_custom_call.1} parent=47 // pred_region
          %v678 = vld [vmem:[%s501] sm:$0x1]
          %v679 = vld [vmem:[%s443] sm:$0x1]
          %v680 = vld [vmem:[%s504] sm:$0x1]
          %v681 = vmul.f32 %v680, 0.5
          %v682 = vmul.f32 %v681, 1.442695
          %v683 = vpow.pop %v682
          %v684 = vmul.f32 %v679, %v683
          %v685 = vadd.f32 %v678, %v684
          %v686 = vld [vmem:[#allocation2] sm:$0xff]
          %v687 = vld [vmem:[#allocation2 + $0x8] sm:$0xff]
          %v689 = vperm.slane %v685, 0
          %v691 = vadd.f32 %v686, %v689
          %v692 = vadd.f32 %v687, %v689
          %693 = vst [vmem:[%s494] sm:$0xff] %v691
          %694 = vst [vmem:[%s494 + $0x8] sm:$0xff] %v692
        $region80: #{tpu_custom_call.1} parent=47 // pred_fallthru
          _
        %s695 = sand.u32 %s247, 1
        %s696 = scalar_lea.sflag [#allocation5], %s695
        %s697 = sand.u32 %s247, 1
        %s698 = smul.addr %s697, 16
        %s699 = scalar_lea.vmem [#allocation12], %s698
        // Predicated region
        $region81: #{tpu_custom_call.1} parent=47 // pred_check
          %p700 = pneg %p257
        $region82: #{tpu_custom_call.1} parent=47 // pred_check_branch
          %702 = sbr.rel (%p700) target = $region84
        $region83: #{tpu_custom_call.1} parent=47 // pred_region
          %s703 = smul.u32 2, %s33
          %705 = vsyncadd %s696, 0
          %s706 = smul.addr %s703, 2
          %s707 = sadd.s32 %s34, %s706
          %s708 = smul.addr %s707, 8
          %s709 = scalar_lea.hbm %s7, %s708
          %s710 = sshll.u32 %s699, 4
          %s711 = int_to_ptr.vmem [resolvable:$true] %s710
          %s712 = sshll.u32 %s709, 4
          %s713 = int_to_ptr.hbm [resolvable:$true] %s712
          %718 = dma.vmem_to_hbm [thread:$0]  %s711, 256, %s713, %s696, 128, 256, 8
        $region84: #{tpu_custom_call.1} parent=47 // pred_fallthru
          _
      $region48: #{tpu_custom_call.1} parent=5 // pred_fallthru
        _
      %p719 = scmp.le.s32.totalorder 2, %s23
      // Predicated region
      $region85: #{tpu_custom_call.1} parent=5 // pred_check
        %p720 = pneg %p719
      $region86: #{tpu_custom_call.1} parent=5 // pred_check_branch
        %722 = sbr.rel (%p720) target = $region88
      $region87: #{tpu_custom_call.1} parent=5 // pred_region
        %s723 = ssub.s32 %s23, 2
        // Predicated region
        $region89: #{tpu_custom_call.1} parent=87 // pred_check
          %p724 = pneg %p263
        $region90: #{tpu_custom_call.1} parent=87 // pred_check_branch
          %726 = sbr.rel (%p724) target = $region92
        $region91: #{tpu_custom_call.1} parent=87 // pred_region
          %s727 = sand.u32 %s248, 1
          %s728 = scalar_lea.sflag [#allocation5], %s727
          %s729 = sand.u32 %s248, 1
          %s730 = smul.addr %s729, 16
          %s731 = scalar_lea.vmem [#allocation12], %s730
          %733 = dma.done %s728, 256
        $region92: #{tpu_custom_call.1} parent=87 // pred_fallthru
          _
      $region88: #{tpu_custom_call.1} parent=5 // pred_fallthru
        _
    $region6: #{tpu_custom_call.1} parent=1 // loop_footer
      %s27 = sadd.s32 1, %s23
    $region7: #{tpu_custom_call.1} parent=1 // loop_footer_branch
      %22 = sbr.rel target = $region3
    $region8: #{tpu_custom_call.1} parent=1 // loop_exit
      _
    %734 = vsyncpa [#allocation4], 1
    %s735 = scalar_lea.sflag [#allocation4], 1
    %736 = vsyncpa %s735, 1
    %737 = vsyncpa [#allocation7], 1
    %s738 = scalar_lea.sflag [#allocation7], 1
    %739 = vsyncpa %s738, 1
    %740 = vsyncpa [#allocation10], 1
    %s741 = scalar_lea.sflag [#allocation10], 1
    %742 = vsyncpa %s741, 1
    %743 = vsyncpa [#allocation5], 1
    %s744 = scalar_lea.sflag [#allocation5], 1
    %745 = vsyncpa %s744, 1

</llo_original>
